<compile_context>
chip_gen: v6e
topology: v6e:2x2x1
jax: 0.10.0
libtpu: 0.0.40
codegen_flags: <defaults>
</compile_context>

<pallas_src>
import functools

import jax
import jax.numpy as jnp
from jax.experimental import pallas as pl
from jax.experimental.pallas import tpu as pltpu

LANE = 128        # lane width for the packed weight slabs / hidden activations
SUB = 8           # f32 sublane count: batch tiles are multiples of this
H1, H2 = 64, 32   # logical hidden widths of the original Net

# Packed parameter buffer layout (single (392, 128) f32 array):
#   rows [  0:128)  W1 (state_count -> 64), zero-padded to 128x128 (only the
#                    first state_count rows are ever read by the kernel)
#   rows [128:256)  W2 (64 -> 32),           zero-padded to 128x128
#   rows [256:384)  W3 (32 -> action_count), zero-padded to 128x128
#   row   384       b1 (zero-padded to 128 lanes)
#   row   385       b2
#   row   386       b3
#   rows [387:392)  zero (sublane alignment)
P_ROWS = 3 * LANE + SUB


def mlp_kernel(x_ref, p_ref, o_ref):
    k = x_ref.shape[-1]          # state_count  (static)
    a = o_ref.shape[-1]          # action_count (static)

    w1 = p_ref[0:k, :]                        # (k, 128); cols >= 64 are zero
    w2 = p_ref[LANE:2 * LANE, :]              # rows >= 64 / cols >= 32 are zero
    w3 = p_ref[2 * LANE:3 * LANE, :]          # rows >= 32 / cols >= a are zero
    b1 = p_ref[3 * LANE + 0:3 * LANE + 1, :]
    b2 = p_ref[3 * LANE + 1:3 * LANE + 2, :]
    b3 = p_ref[3 * LANE + 2:3 * LANE + 3, :]

    h1 = jnp.maximum(
        jnp.dot(x_ref[...], w1, preferred_element_type=jnp.float32) + b1, 0.0)
    h2 = jnp.maximum(
        jnp.dot(h1, w2, preferred_element_type=jnp.float32) + b2, 0.0)
    o = jnp.dot(h2, w3, preferred_element_type=jnp.float32) + b3
    # Keep the matmuls at full 128-lane width (MXU is nowhere near binding);
    # only the store is narrowed to the real action_count.
    o_ref[...] = o[:, :a].astype(o_ref.dtype)


def pack_params(params):
    """(w1,b1,w2,b2,w3,b3) [weights (in,out), biases (1,out)] -> (392,128) f32.

    Do this ONCE per parameter update, not per forward call.
    Padded columns/rows are zero so they contribute exactly nothing downstream.
    """
    w1, b1, w2, b2, w3, b3 = params
    # The packed layout assumes every logical dim fits in one 128-wide slab.
    assert w1.shape[0] <= LANE and w1.shape[1] <= LANE, "state_count/H1 > 128"
    assert w2.shape[0] <= LANE and w2.shape[1] <= LANE
    assert w3.shape[0] <= LANE and w3.shape[1] <= LANE, "action_count > 128"

    packed = jnp.zeros((P_ROWS, LANE), jnp.float32)
    packed = packed.at[0:w1.shape[0], 0:w1.shape[1]].set(w1.astype(jnp.float32))
    packed = packed.at[LANE:LANE + w2.shape[0], 0:w2.shape[1]].set(w2.astype(jnp.float32))
    packed = packed.at[2 * LANE:2 * LANE + w3.shape[0], 0:w3.shape[1]].set(w3.astype(jnp.float32))
    packed = packed.at[3 * LANE + 0, 0:b1.shape[1]].set(b1[0].astype(jnp.float32))
    packed = packed.at[3 * LANE + 1, 0:b2.shape[1]].set(b2[0].astype(jnp.float32))
    packed = packed.at[3 * LANE + 2, 0:b3.shape[1]].set(b3[0].astype(jnp.float32))
    return packed


def _round_up(n, m):
    return ((n + m - 1) // m) * m


@functools.partial(jax.jit, static_argnames=("action_count", "block_b"))
def net_forward(x, packed_params, *, action_count, block_b=512):
    """Forward pass of Net. x: (B, state_count) f32. Returns (B, action_count)."""
    B, K = x.shape
    assert K <= LANE, "state_count must be <= 128 for the packed layout"

    # Batch tiling: multiples of 8 sublanes, at most block_b rows per grid step.
    B8 = _round_up(B, SUB)
    TB = min(block_b, B8)
    # If the whole batch would be a single grid step, split it in two so both
    # TensorCores on v7x get a tile ("parallel" axis). Costs one extra ~0.35us
    # step on single-TC parts, gains ~2x on v7x.
    if TB == B8 and B8 >= 2 * SUB:
        TB = _round_up(-(-B8 // 2), SUB)
    B_pad = _round_up(B8, TB)
    grid = (B_pad // TB,)

    x = x.astype(jnp.float32)
    if B_pad != B:
        x = jnp.pad(x, ((0, B_pad - B), (0, 0)))   # batch-dim pad only

    cost = pl.CostEstimate(
        flops=2 * B_pad * (K * H1 + H1 * H2 + H2 * action_count),
        transcendentals=0,
        bytes_accessed=4 * (B_pad * K + packed_params.size + B_pad * action_count),
    )

    out = pl.pallas_call(
        mlp_kernel,
        out_shape=jax.ShapeDtypeStruct((B_pad, action_count), jnp.float32),
        grid_spec=pltpu.PrefetchScalarGridSpec(
            num_scalar_prefetch=0,
            grid=grid,
            in_specs=[
                # x tile: unpadded feature dim (full-array last dim is legal),
                # streamed / double-buffered over the batch grid.
                pl.BlockSpec((TB, K), lambda i: (i, 0)),
                # packed params: constant index_map -> VMEM-resident, 1 DMA.
                pl.BlockSpec((P_ROWS, LANE), lambda i: (0, 0)),
            ],
            # Narrow output slab: only action_count lanes hit HBM.
            out_specs=pl.BlockSpec((TB, action_count), lambda i: (i, 0)),
        ),
        compiler_params=pltpu.CompilerParams(
            dimension_semantics=("parallel",),  # shards batch tiles across TCs on v7x
        ),
        cost_estimate=cost,
    )(x, packed_params)

    return out[:B, :]


def init_params(key, state_count, action_count):
    """Mirror Net.__init__: weights ~ N(0, 0.1); biases small uniform (PyTorch default)."""
    ks = jax.random.split(key, 6)

    def linear(kw, kb, fan_in, fan_out):
        # PyTorch stores weight as (out, in); we keep (in, out) for x @ W.
        w = 0.1 * jax.random.normal(kw, (fan_in, fan_out), dtype=jnp.float32)
        bound = 1.0 / jnp.sqrt(float(fan_in))
        b = jax.random.uniform(kb, (1, fan_out), minval=-bound, maxval=bound,
                               dtype=jnp.float32)
        return w, b

    w1, b1 = linear(ks[0], ks[1], state_count, H1)
    w2, b2 = linear(ks[2], ks[3], H1, H2)
    w3, b3 = linear(ks[4], ks[5], H2, action_count)
    return (w1, b1, w2, b2, w3, b3)


def reference_forward(x, params):
    w1, b1, w2, b2, w3, b3 = params
    h1 = jnp.maximum(x @ w1 + b1, 0.0)
    h2 = jnp.maximum(h1 @ w2 + b2, 0.0)
    return h2 @ w3 + b3


# TODO(synk): save_me/load_me (torch.save / torch.load checkpoint I/O) have no
# Pallas equivalent and are intentionally omitted.

if __name__ == "__main__":
    STATE_COUNT = 8    # kwargs['state_count']
    ACTION_COUNT = 4   # kwargs['action_count']
    BATCH = 2

    key = jax.random.PRNGKey(0)
    k_x, k_p, k_x2 = jax.random.split(key, 3)

    params = init_params(k_p, STATE_COUNT, ACTION_COUNT)
    packed = pack_params(params)

    # Small batch (single grid step, batch padded 2 -> 8 sublanes).
    x = jax.random.normal(k_x, (BATCH, STATE_COUNT), dtype=jnp.float32)
    out = jax.block_until_ready(
        net_forward(x, packed, action_count=ACTION_COUNT))
    ref = reference_forward(x, params)
    assert out.shape == (BATCH, ACTION_COUNT)
    assert jnp.allclose(out, ref, atol=1e-5, rtol=1e-5)

    # Larger batch exercises the multi-step grid (split into 2 parallel tiles).
    x2 = jax.random.normal(k_x2, (130, STATE_COUNT), dtype=jnp.float32)
    out2 = jax.block_until_ready(
        net_forward(x2, packed, action_count=ACTION_COUNT))
    ref2 = reference_forward(x2, params)
    assert out2.shape == (130, ACTION_COUNT)
    assert jnp.allclose(out2, ref2, atol=1e-5, rtol=1e-5)

    print("KERNEL_OK")
</pallas_src>

<mosaic_0001>
module attributes {stable_mosaic.version = 11 : i64} {
  func.func @mlp_kernel(%arg0: i32, %arg1: memref<8x8xf32, #tpu.memory_space<vmem>>, %arg2: memref<392x128xf32, #tpu.memory_space<vmem>>, %arg3: memref<8x4xf32, #tpu.memory_space<vmem>>) attributes {dimension_semantics = [#tpu.dimension_semantics<parallel>], iteration_bounds = array<i64: 1>, scalar_prefetch = 0 : i64, scratch_operands = 0 : i64, tpu.core_type = #tpu.core_type<tc>, window_params = [{transform_indices = @transform_0, window_bounds = array<i64: 8, 8>}, {pipeline_mode = #tpu.pipeline_mode<synchronous>, transform_indices = @transform_1, window_bounds = array<i64: 392, 128>}, {transform_indices = @transform_2, window_bounds = array<i64: 8, 4>}]} {
    %c0 = arith.constant 0 : index
    %c0_0 = arith.constant 0 : index
    %0 = vector.load %arg2[%c0, %c0_0] : memref<392x128xf32, #tpu.memory_space<vmem>>, vector<8x128xf32>
    %c128 = arith.constant 128 : index
    %c0_1 = arith.constant 0 : index
    %1 = vector.load %arg2[%c128, %c0_1] : memref<392x128xf32, #tpu.memory_space<vmem>>, vector<128x128xf32>
    %c256 = arith.constant 256 : index
    %c0_2 = arith.constant 0 : index
    %2 = vector.load %arg2[%c256, %c0_2] : memref<392x128xf32, #tpu.memory_space<vmem>>, vector<128x128xf32>
    %c384 = arith.constant 384 : index
    %c0_3 = arith.constant 0 : index
    %3 = vector.load %arg2[%c384, %c0_3] : memref<392x128xf32, #tpu.memory_space<vmem>>, vector<1x128xf32>
    %c385 = arith.constant 385 : index
    %c0_4 = arith.constant 0 : index
    %4 = vector.load %arg2[%c385, %c0_4] : memref<392x128xf32, #tpu.memory_space<vmem>>, vector<1x128xf32>
    %c386 = arith.constant 386 : index
    %c0_5 = arith.constant 0 : index
    %5 = vector.load %arg2[%c386, %c0_5] : memref<392x128xf32, #tpu.memory_space<vmem>>, vector<1x128xf32>
    %c0_6 = arith.constant 0 : index
    %c0_7 = arith.constant 0 : index
    %6 = vector.load %arg1[%c0_6, %c0_7] : memref<8x8xf32, #tpu.memory_space<vmem>>, vector<8x8xf32>
    %cst = arith.constant dense<0.000000e+00> : vector<8x128xf32>
    %7 = tpu.matmul %6, %0, %cst {dimension_numbers = #tpu.dot_dimension_numbers<[1], [0], [0], [1], [0, 0, 1, 1], [], []>} : vector<8x8xf32>, vector<8x128xf32>, vector<8x128xf32> -> vector<8x128xf32>
    %8 = vector.broadcast %3 : vector<1x128xf32> to vector<8x128xf32>
    %9 = arith.addf %7, %8 : vector<8x128xf32>
    %cst_8 = arith.constant 0.000000e+00 : f32
    %10 = vector.broadcast %cst_8 : f32 to vector<8x128xf32>
    %11 = arith.maximumf %9, %10 : vector<8x128xf32>
    %cst_9 = arith.constant dense<0.000000e+00> : vector<8x128xf32>
    %12 = tpu.matmul %11, %1, %cst_9 {dimension_numbers = #tpu.dot_dimension_numbers<[1], [0], [0], [1], [0, 0, 1, 1], [], []>} : vector<8x128xf32>, vector<128x128xf32>, vector<8x128xf32> -> vector<8x128xf32>
    %13 = vector.broadcast %4 : vector<1x128xf32> to vector<8x128xf32>
    %14 = arith.addf %12, %13 : vector<8x128xf32>
    %cst_10 = arith.constant 0.000000e+00 : f32
    %15 = vector.broadcast %cst_10 : f32 to vector<8x128xf32>
    %16 = arith.maximumf %14, %15 : vector<8x128xf32>
    %cst_11 = arith.constant dense<0.000000e+00> : vector<8x128xf32>
    %17 = tpu.matmul %16, %2, %cst_11 {dimension_numbers = #tpu.dot_dimension_numbers<[1], [0], [0], [1], [0, 0, 1, 1], [], []>} : vector<8x128xf32>, vector<128x128xf32>, vector<8x128xf32> -> vector<8x128xf32>
    %18 = vector.broadcast %5 : vector<1x128xf32> to vector<8x128xf32>
    %19 = arith.addf %17, %18 : vector<8x128xf32>
    %20 = vector.extract_strided_slice %19 {offsets = [0, 0], sizes = [8, 4], strides = [1, 1]} : vector<8x128xf32> to vector<8x4xf32>
    %c0_12 = arith.constant 0 : index
    %c0_13 = arith.constant 0 : index
    %21 = vector.load %arg3[%c0_12, %c0_13] : memref<8x4xf32, #tpu.memory_space<vmem>>, vector<8x4xf32>
    tpu.vector_store %arg3[%c0_12, %c0_13], %20 {strides = array<i32>} : memref<8x4xf32, #tpu.memory_space<vmem>>, vector<8x4xf32>,
    return
  }
  func.func @transform_0(%arg0: i32) -> (i32, i32) {
    %c0_i32 = arith.constant 0 : i32
    %c0_i32_0 = arith.constant 0 : i32
    return %arg0, %c0_i32 : i32, i32
  }
  func.func @transform_1(%arg0: i32) -> (i32, i32) {
    %c0_i32 = arith.constant 0 : i32
    %c0_i32_0 = arith.constant 0 : i32
    %c0_i32_1 = arith.constant 0 : i32
    return %c0_i32, %c0_i32_0 : i32, i32
  }
  func.func @transform_2(%arg0: i32) -> (i32, i32) {
    %c0_i32 = arith.constant 0 : i32
    %c0_i32_0 = arith.constant 0 : i32
    return %arg0, %c0_i32 : i32, i32
  }
}

</mosaic_0001>

<llo_original>
// kernel: net_forward.1
$region0: #{net_forward.1}
  #allocation0 [shape = 'u32[]', space=smem, size = 0x4, offset = 0x4, fixed_abs, tag = 'smem constant byte address 0x4 - core index']
  #allocation1 [shape = 'u32[144,128]{1,0:T(1,128)}', space=vmem, size = 0x12000, scoped, tag = 'internal scratch']
  %s0 = inlined_call_operand.vmem [shape: f32[8,8], index: 0, kind: input, shape index: {}]
  %s1 = inlined_call_operand.hbm [shape: f32[392,128], index: 1, kind: input, shape index: {}]
  %s2 = inlined_call_operand.vmem [shape: f32[8,4], index: 2, kind: output, shape index: {}]
  %s3 = sld [smem:[#allocation0]]
  $region22: #{net_forward.1} parent=0
    _
  %s5 = ssub.s32 1, %s3
  %s6 = scalar_select 0, %s5, %s3
  $region1: #{net_forward.1} parent=0
    #allocation2 [shape = 'u8[200704]{0}', space=vmem, size = 0x31000, scoped, tag = 'input window, operand 1, single buffered']
    #allocation3 [shape = 's32[1]{0}', space=sflag, size = 0x4, scoped, tag = 'scoped memory for net_forward.1']
    %7 = vsyncpa [#allocation3], 0
    // Predicated region
    $region2: #{net_forward.1} parent=1 // pred_check
      _
    $region3: #{net_forward.1} parent=1 // pred_check_branch
      %9 = sbr.rel (0) target = $region5
    $region4: #{net_forward.1} parent=1 // pred_region
      _
    $region5: #{net_forward.1} parent=1 // pred_fallthru
      _
    // Predicated region
    $region6: #{net_forward.1} parent=1 // pred_check
      _
    $region7: #{net_forward.1} parent=1 // pred_check_branch
      %11 = sbr.rel (0) target = $region9
    $region8: #{net_forward.1} parent=1 // pred_region
      %s13 = ssub.s32 6272, 6272
      %14 = vsyncadd [#allocation3], %s13
      %s15 = sshll.u32 [#allocation2], 4
      %s16 = int_to_ptr.vmem [resolvable:$true] %s15
      %21 = dma.hbm_to_vmem [thread:$0]  %s1, 6272, %s16, [#allocation3], 128, 128, 8
    $region9: #{net_forward.1} parent=1 // pred_fallthru
      _
    // Predicated region
    $region10: #{net_forward.1} parent=1 // pred_check
      _
    $region11: #{net_forward.1} parent=1 // pred_check_branch
      %23 = sbr.rel (0) target = $region13
    $region12: #{net_forward.1} parent=1 // pred_region
      %24 = dma.done [#allocation3], 6272
    $region13: #{net_forward.1} parent=1 // pred_fallthru
      _
    %v25 = vld [vmem:[#allocation2] sm:$0xff]
    %v26 = vld [vmem:[#allocation2 + $0x80] sm:$0xff]
    %v27 = vld [vmem:[#allocation2 + $0x88] sm:$0xff]
    %v28 = vld [vmem:[#allocation2 + $0x90] sm:$0xff]
    %v29 = vld [vmem:[#allocation2 + $0x98] sm:$0xff]
    %v30 = vld [vmem:[#allocation2 + $0xa0] sm:$0xff]
    %v31 = vld [vmem:[#allocation2 + $0xa8] sm:$0xff]
    %v32 = vld [vmem:[#allocation2 + $0xb0] sm:$0xff]
    %v33 = vld [vmem:[#allocation2 + $0xb8] sm:$0xff]
    %v34 = vld [vmem:[#allocation2 + $0xc0] sm:$0xff]
    %v35 = vld [vmem:[#allocation2 + $0xc8] sm:$0xff]
    %v36 = vld [vmem:[#allocation2 + $0xd0] sm:$0xff]
    %v37 = vld [vmem:[#allocation2 + $0xd8] sm:$0xff]
    %v38 = vld [vmem:[#allocation2 + $0xe0] sm:$0xff]
    %v39 = vld [vmem:[#allocation2 + $0xe8] sm:$0xff]
    %v40 = vld [vmem:[#allocation2 + $0xf0] sm:$0xff]
    %v41 = vld [vmem:[#allocation2 + $0xf8] sm:$0xff]
    %v42 = vld [vmem:[#allocation2 + $0x100] sm:$0xff]
    %v43 = vld [vmem:[#allocation2 + $0x108] sm:$0xff]
    %v44 = vld [vmem:[#allocation2 + $0x110] sm:$0xff]
    %v45 = vld [vmem:[#allocation2 + $0x118] sm:$0xff]
    %v46 = vld [vmem:[#allocation2 + $0x120] sm:$0xff]
    %v47 = vld [vmem:[#allocation2 + $0x128] sm:$0xff]
    %v48 = vld [vmem:[#allocation2 + $0x130] sm:$0xff]
    %v49 = vld [vmem:[#allocation2 + $0x138] sm:$0xff]
    %v50 = vld [vmem:[#allocation2 + $0x140] sm:$0xff]
    %v51 = vld [vmem:[#allocation2 + $0x148] sm:$0xff]
    %v52 = vld [vmem:[#allocation2 + $0x150] sm:$0xff]
    %v53 = vld [vmem:[#allocation2 + $0x158] sm:$0xff]
    %v54 = vld [vmem:[#allocation2 + $0x160] sm:$0xff]
    %v55 = vld [vmem:[#allocation2 + $0x168] sm:$0xff]
    %v56 = vld [vmem:[#allocation2 + $0x170] sm:$0xff]
    %v57 = vld [vmem:[#allocation2 + $0x178] sm:$0xff]
    %v58 = vld [vmem:[#allocation2 + $0x180] sm:$0x1]
    %v59 = vld [vmem:[#allocation2 + $0x181] sm:$0x1]
    %v60 = vld [vmem:[#allocation2 + $0x182] sm:$0x1]
    %v61 = vld [vmem:[%s0] sm:$0xff]
    %v62 = vlaneseq
    %v63 = vshrl.u32 %v62, 7
    %v64 = vsub.s32 0, %v63
    %v65 = vrot.slane %v58, %v64
    %vm66 = vcmask 64512
    %v68 = vsel %vm66, %v61, 0
    %70 = vmatprep.subr.mxu0 0.0
    %71 = vmatpush1.msra.mxu0 0.0
    %72 = vmatprep.subr.mxu0 0.0
    %73 = vmatpush1.msra.mxu0 0.0
    %74 = vmatprep.subr.mxu0 0.0
    %75 = vmatpush1.msra.mxu0 0.0
    %76 = vmatprep.subr.mxu0 0.0
    %77 = vmatpush1.msra.mxu0 0.0
    %78 = vmatprep.subr.mxu0 0.0
    %79 = vmatpush1.msra.mxu0 0.0
    %80 = vmatprep.subr.mxu0 0.0
    %81 = vmatpush1.msra.mxu0 0.0
    %82 = vmatprep.subr.mxu0 0.0
    %83 = vmatpush1.msra.mxu0 0.0
    %84 = vmatprep.subr.mxu0 0.0
    %85 = vmatpush1.msra.mxu0 0.0
    %86 = vmatprep.subr.mxu0 0.0
    %87 = vmatpush1.msra.mxu0 0.0
    %88 = vmatprep.subr.mxu0 0.0
    %89 = vmatpush1.msra.mxu0 0.0
    %90 = vmatprep.subr.mxu0 0.0
    %91 = vmatpush1.msra.mxu0 0.0
    %92 = vmatprep.subr.mxu0 0.0
    %93 = vmatpush1.msra.mxu0 0.0
    %94 = vmatprep.subr.mxu0 0.0
    %95 = vmatpush1.msra.mxu0 0.0
    %96 = vmatprep.subr.mxu0 0.0
    %97 = vmatpush1.msra.mxu0 0.0
    %98 = vmatprep.subr.mxu0 0.0
    %99 = vmatpush1.msra.mxu0 0.0
    %100 = vmatprep.subr.mxu0 0.0
    %101 = vmatpush1.msra.mxu0 %v25
    %102 = vmatprep.subr.mxu0 0.0
    %103 = vmatpush2.msra.mxu0 0.0
    %104 = vmatprep.subr.mxu0 0.0
    %105 = vmatpush2.msra.mxu0 0.0
    %106 = vmatprep.subr.mxu0 0.0
    %107 = vmatpush2.msra.mxu0 0.0
    %108 = vmatprep.subr.mxu0 0.0
    %109 = vmatpush2.msra.mxu0 0.0
    %110 = vmatprep.subr.mxu0 0.0
    %111 = vmatpush2.msra.mxu0 0.0
    %112 = vmatprep.subr.mxu0 0.0
    %113 = vmatpush2.msra.mxu0 0.0
    %114 = vmatprep.subr.mxu0 0.0
    %115 = vmatpush2.msra.mxu0 0.0
    %116 = vmatprep.subr.mxu0 0.0
    %117 = vmatpush2.msra.mxu0 0.0
    %118 = vmatprep.subr.mxu0 0.0
    %119 = vmatpush2.msra.mxu0 0.0
    %120 = vmatprep.subr.mxu0 0.0
    %121 = vmatpush2.msra.mxu0 0.0
    %122 = vmatprep.subr.mxu0 0.0
    %123 = vmatpush2.msra.mxu0 0.0
    %124 = vmatprep.subr.mxu0 0.0
    %125 = vmatpush2.msra.mxu0 0.0
    %126 = vmatprep.subr.mxu0 0.0
    %127 = vmatpush2.msra.mxu0 0.0
    %128 = vmatprep.subr.mxu0 0.0
    %129 = vmatpush2.msra.mxu0 0.0
    %130 = vmatprep.subr.mxu0 0.0
    %131 = vmatpush2.msra.mxu0 0.0
    %132 = vmatprep.subr.mxu0 0.0
    %133 = vmatpush2.msra.mxu0 0.0
    %134 = vmatprep.mubr.f32.mxu0 0.0
    %135 = vmatmul.mubr.f32.gmra.mxu0 %v68
    %v136 = vpop.f32.mrf.mxu0
    %v137 = vadd.f32 %v65, %v136
    %v138 = vpop.f32.mrf.mxu0
    %139 = vdwg.mxu0
    %v140 = vmax.f32 %v137, 0.0
    %v141 = vlaneseq
    %v142 = vshrl.u32 %v141, 7
    %v143 = vsub.s32 0, %v142
    %v144 = vrot.slane %v59, %v143
    %145 = vmatprep.subr.mxu0 0.0
    %146 = vmatpush1.msra.mxu0 %v41
    %147 = vmatprep.subr.mxu0 0.0
    %148 = vmatpush1.msra.mxu0 %v40
    %149 = vmatprep.subr.mxu0 0.0
    %150 = vmatpush1.msra.mxu0 %v39
    %151 = vmatprep.subr.mxu0 0.0
    %152 = vmatpush1.msra.mxu0 %v38
    %153 = vmatprep.subr.mxu0 0.0
    %154 = vmatpush1.msra.mxu0 %v37
    %155 = vmatprep.subr.mxu0 0.0
    %156 = vmatpush1.msra.mxu0 %v36
    %157 = vmatprep.subr.mxu0 0.0
    %158 = vmatpush1.msra.mxu0 %v35
    %159 = vmatprep.subr.mxu0 0.0
    %160 = vmatpush1.msra.mxu0 %v34
    %161 = vmatprep.subr.mxu0 0.0
    %162 = vmatpush1.msra.mxu0 %v33
    %163 = vmatprep.subr.mxu0 0.0
    %164 = vmatpush1.msra.mxu0 %v32
    %165 = vmatprep.subr.mxu0 0.0
    %166 = vmatpush1.msra.mxu0 %v31
    %167 = vmatprep.subr.mxu0 0.0
    %168 = vmatpush1.msra.mxu0 %v30
    %169 = vmatprep.subr.mxu0 0.0
    %170 = vmatpush1.msra.mxu0 %v29
    %171 = vmatprep.subr.mxu0 0.0
    %172 = vmatpush1.msra.mxu0 %v28
    %173 = vmatprep.subr.mxu0 0.0
    %174 = vmatpush1.msra.mxu0 %v27
    %175 = vmatprep.subr.mxu0 0.0
    %176 = vmatpush1.msra.mxu0 %v26
    %177 = vmatprep.subr.mxu0 0.0
    %178 = vmatpush2.msra.mxu0 0.0
    %179 = vmatprep.subr.mxu0 0.0
    %180 = vmatpush2.msra.mxu0 0.0
    %181 = vmatprep.subr.mxu0 0.0
    %182 = vmatpush2.msra.mxu0 0.0
    %183 = vmatprep.subr.mxu0 0.0
    %184 = vmatpush2.msra.mxu0 0.0
    %185 = vmatprep.subr.mxu0 0.0
    %186 = vmatpush2.msra.mxu0 0.0
    %187 = vmatprep.subr.mxu0 0.0
    %188 = vmatpush2.msra.mxu0 0.0
    %189 = vmatprep.subr.mxu0 0.0
    %190 = vmatpush2.msra.mxu0 0.0
    %191 = vmatprep.subr.mxu0 0.0
    %192 = vmatpush2.msra.mxu0 0.0
    %193 = vmatprep.subr.mxu0 0.0
    %194 = vmatpush2.msra.mxu0 0.0
    %195 = vmatprep.subr.mxu0 0.0
    %196 = vmatpush2.msra.mxu0 0.0
    %197 = vmatprep.subr.mxu0 0.0
    %198 = vmatpush2.msra.mxu0 0.0
    %199 = vmatprep.subr.mxu0 0.0
    %200 = vmatpush2.msra.mxu0 0.0
    %201 = vmatprep.subr.mxu0 0.0
    %202 = vmatpush2.msra.mxu0 0.0
    %203 = vmatprep.subr.mxu0 0.0
    %204 = vmatpush2.msra.mxu0 0.0
    %205 = vmatprep.subr.mxu0 0.0
    %206 = vmatpush2.msra.mxu0 0.0
    %207 = vmatprep.subr.mxu0 0.0
    %208 = vmatpush2.msra.mxu0 0.0
    %209 = vmatprep.mubr.f32.mxu0 0.0
    %210 = vmatmul.mubr.f32.gmra.mxu0 %v140
    %v211 = vpop.f32.mrf.mxu0
    %v212 = vadd.f32 %v144, %v211
    %v213 = vpop.f32.mrf.mxu0
    %214 = vdwg.mxu0
    %v215 = vmax.f32 %v212, 0.0
    %v216 = vlaneseq
    %v217 = vshrl.u32 %v216, 7
    %v218 = vsub.s32 0, %v217
    %v219 = vrot.slane %v60, %v218
    %220 = vmatprep.subr.mxu0 0.0
    %221 = vmatpush1.msra.mxu0 %v57
    %222 = vmatprep.subr.mxu0 0.0
    %223 = vmatpush1.msra.mxu0 %v56
    %224 = vmatprep.subr.mxu0 0.0
    %225 = vmatpush1.msra.mxu0 %v55
    %226 = vmatprep.subr.mxu0 0.0
    %227 = vmatpush1.msra.mxu0 %v54
    %228 = vmatprep.subr.mxu0 0.0
    %229 = vmatpush1.msra.mxu0 %v53
    %230 = vmatprep.subr.mxu0 0.0
    %231 = vmatpush1.msra.mxu0 %v52
    %232 = vmatprep.subr.mxu0 0.0
    %233 = vmatpush1.msra.mxu0 %v51
    %234 = vmatprep.subr.mxu0 0.0
    %235 = vmatpush1.msra.mxu0 %v50
    %236 = vmatprep.subr.mxu0 0.0
    %237 = vmatpush1.msra.mxu0 %v49
    %238 = vmatprep.subr.mxu0 0.0
    %239 = vmatpush1.msra.mxu0 %v48
    %240 = vmatprep.subr.mxu0 0.0
    %241 = vmatpush1.msra.mxu0 %v47
    %242 = vmatprep.subr.mxu0 0.0
    %243 = vmatpush1.msra.mxu0 %v46
    %244 = vmatprep.subr.mxu0 0.0
    %245 = vmatpush1.msra.mxu0 %v45
    %246 = vmatprep.subr.mxu0 0.0
    %247 = vmatpush1.msra.mxu0 %v44
    %248 = vmatprep.subr.mxu0 0.0
    %249 = vmatpush1.msra.mxu0 %v43
    %250 = vmatprep.subr.mxu0 0.0
    %251 = vmatpush1.msra.mxu0 %v42
    %252 = vmatprep.subr.mxu0 0.0
    %253 = vmatpush2.msra.mxu0 0.0
    %254 = vmatprep.subr.mxu0 0.0
    %255 = vmatpush2.msra.mxu0 0.0
    %256 = vmatprep.subr.mxu0 0.0
    %257 = vmatpush2.msra.mxu0 0.0
    %258 = vmatprep.subr.mxu0 0.0
    %259 = vmatpush2.msra.mxu0 0.0
    %260 = vmatprep.subr.mxu0 0.0
    %261 = vmatpush2.msra.mxu0 0.0
    %262 = vmatprep.subr.mxu0 0.0
    %263 = vmatpush2.msra.mxu0 0.0
    %264 = vmatprep.subr.mxu0 0.0
    %265 = vmatpush2.msra.mxu0 0.0
    %266 = vmatprep.subr.mxu0 0.0
    %267 = vmatpush2.msra.mxu0 0.0
    %268 = vmatprep.subr.mxu0 0.0
    %269 = vmatpush2.msra.mxu0 0.0
    %270 = vmatprep.subr.mxu0 0.0
    %271 = vmatpush2.msra.mxu0 0.0
    %272 = vmatprep.subr.mxu0 0.0
    %273 = vmatpush2.msra.mxu0 0.0
    %274 = vmatprep.subr.mxu0 0.0
    %275 = vmatpush2.msra.mxu0 0.0
    %276 = vmatprep.subr.mxu0 0.0
    %277 = vmatpush2.msra.mxu0 0.0
    %278 = vmatprep.subr.mxu0 0.0
    %279 = vmatpush2.msra.mxu0 0.0
    %280 = vmatprep.subr.mxu0 0.0
    %281 = vmatpush2.msra.mxu0 0.0
    %282 = vmatprep.subr.mxu0 0.0
    %283 = vmatpush2.msra.mxu0 0.0
    %284 = vmatprep.mubr.f32.mxu0 0.0
    %285 = vmatmul.mubr.f32.gmra.mxu0 %v215
    %v286 = vpop.f32.mrf.mxu0
    %v287 = vadd.f32 %v219, %v286
    %v288 = vpop.f32.mrf.mxu0
    %289 = vdwg.mxu0
    %vm290 = vcmask 31744
    %291 = vst.msk [vmem:[%s2] sm:$0xff] %vm290, %v287
    // Predicated region
    $region14: #{net_forward.1} parent=1 // pred_check
      _
    $region15: #{net_forward.1} parent=1 // pred_check_branch
      %293 = sbr.rel (0) target = $region17
    $region16: #{net_forward.1} parent=1 // pred_region
      _
    $region17: #{net_forward.1} parent=1 // pred_fallthru
      _
    // Predicated region
    $region18: #{net_forward.1} parent=1 // pred_check
      _
    $region19: #{net_forward.1} parent=1 // pred_check_branch
      %295 = sbr.rel (0) target = $region21
    $region20: #{net_forward.1} parent=1 // pred_region
      _
    $region21: #{net_forward.1} parent=1 // pred_fallthru
      _
    %296 = vsyncpa [#allocation3], 1

</llo_original>
